<compile_context>
chip_gen: v5e
topology: v5e:2x2
jax: 0.10.0
libtpu: 0.0.40
codegen_flags: <defaults>
</compile_context>

<pallas_src>
import math
from dataclasses import dataclass
from functools import partial

import jax
import jax.numpy as jnp
from jax.experimental import pallas as pl
from jax.experimental.pallas import tpu as pltpu


@dataclass
class ViTConfig:
    hidden_size: int = 32
    intermediate_size: int = 128
    hidden_act: str = "gelu"      # HF ACT2FN["gelu"] == exact (erf) GELU


# ----------------------------- in-kernel math -----------------------------

def _erf_f32(x):
    # float32-accurate erf (Abramowitz & Stegun 7.1.26, |err| < 1.5e-7); used so the
    # exact GELU lowers on Mosaic without relying on a lax.erf lowering rule.
    a1, a2, a3, a4, a5 = 0.254829592, -0.284496736, 1.421413741, -1.453152027, 1.061405429
    p = 0.3275911
    sign = jnp.where(x >= 0.0, 1.0, -1.0)
    ax = jnp.abs(x)
    t = 1.0 / (1.0 + p * ax)
    poly = ((((a5 * t + a4) * t + a3) * t + a2) * t + a1) * t
    return sign * (1.0 - poly * jnp.exp(-ax * ax))


def _gelu_exact(x):
    return 0.5 * x * (1.0 + _erf_f32(x * 0.7071067811865476))


# ----------------------------- kernel -----------------------------

def _vit_intermediate_kernel(x_ref, w_ref, b_ref, o_ref, acc_ref, *, compute_dtype):
    k = pl.program_id(2)

    @pl.when(k == 0)
    def _():
        acc_ref[...] = jnp.zeros_like(acc_ref)

    xb = x_ref[...]
    wb = w_ref[...]
    if compute_dtype is not None:
        xb = xb.astype(compute_dtype)
        wb = wb.astype(compute_dtype)
    acc_ref[...] += jnp.dot(xb, wb, preferred_element_type=jnp.float32)

    @pl.when(k == pl.num_programs(2) - 1)
    def _():
        h = acc_ref[...] + b_ref[...].astype(jnp.float32)
        o_ref[...] = _gelu_exact(h).astype(o_ref.dtype)


def _round_up(x, m):
    return (x + m - 1) // m * m


def vit_intermediate_forward(x, weight, bias, *, tm=256, ti=512, tk=256,
                             compute_dtype=None):
    """GELU(x @ weight.T + bias), weight in torch Linear layout (I, D).

    x: (..., D) -> (..., I).  compute_dtype=jnp.bfloat16 opts into bf16 MXU
    inputs (f32 accumulation) on v6e/v7x; default None keeps f32 semantics.
    """
    *lead, D = x.shape
    I = weight.shape[0]
    M = math.prod(lead) if lead else 1

    x2 = x.reshape(M, D)
    wT = jnp.transpose(weight)          # (D, I) so the kernel matmul is row-major
    b2 = bias.reshape(1, I)

    # Tile sizes: token tile sublane-aligned (x8), output tile lane-aligned (x128).
    tm = min(tm, _round_up(M, 8))
    ti = min(ti, _round_up(I, 128))
    if D <= tk:
        tk = D                          # single K step; full-dim block is legal

    Mp = _round_up(M, tm)
    Ip = _round_up(I, ti)
    Dp = _round_up(D, tk)
    if (Mp, Dp) != (M, D):
        x2 = jnp.pad(x2, ((0, Mp - M), (0, Dp - D)))
    if (Dp, Ip) != (D, I):
        wT = jnp.pad(wT, ((0, Dp - D), (0, Ip - I)))
    if Ip != I:
        b2 = jnp.pad(b2, ((0, 0), (0, Ip - I)))

    grid = (Mp // tm, Ip // ti, Dp // tk)

    cost = pl.CostEstimate(
        flops=2 * Mp * Dp * Ip,
        transcendentals=Mp * Ip,                                   # exp inside erf
        bytes_accessed=(x2.size + wT.size + b2.size) * 4 + Mp * Ip * 4,
    )

    kernel = partial(_vit_intermediate_kernel, compute_dtype=compute_dtype)
    out = pl.pallas_call(
        kernel,
        out_shape=jax.ShapeDtypeStruct((Mp, Ip), x.dtype),
        grid=grid,
        in_specs=[
            pl.BlockSpec((tm, tk), lambda i, j, k: (i, k)),        # activations
            pl.BlockSpec((tk, ti), lambda i, j, k: (k, j)),        # weight (D, I)
            pl.BlockSpec((1, ti), lambda i, j, k: (0, j)),         # bias
        ],
        out_specs=pl.BlockSpec((tm, ti), lambda i, j, k: (i, j)),
        scratch_shapes=[pltpu.VMEM((tm, ti), jnp.float32)],
        compiler_params=pltpu.CompilerParams(
            dimension_semantics=("parallel", "parallel", "arbitrary")),
        cost_estimate=cost,
    )(x2, wT, b2)

    return out[:M, :I].reshape(*lead, I)


# ----------------------------- demo -----------------------------

if __name__ == "__main__":
    cfg = ViTConfig(hidden_size=32, intermediate_size=128, hidden_act="gelu")
    # TODO(synk): only hidden_act == "gelu" (exact erf GELU) is implemented; other
    # ACT2FN entries / callable activations are not translated.

    key = jax.random.PRNGKey(0)
    k_x, k_w, k_b = jax.random.split(key, 3)

    B, S, D, I = 2, 8, cfg.hidden_size, cfg.intermediate_size
    x = jax.random.normal(k_x, (B, S, D), jnp.float32)
    # torch nn.Linear default init: U(-1/sqrt(fan_in), 1/sqrt(fan_in))
    bound = 1.0 / math.sqrt(D)
    weight = jax.random.uniform(k_w, (I, D), jnp.float32, -bound, bound)
    bias = jax.random.uniform(k_b, (I,), jnp.float32, -bound, bound)

    out = vit_intermediate_forward(x, weight, bias)
    out = jax.block_until_ready(out)

    ref = jax.nn.gelu(jnp.einsum("bsd,id->bsi", x, weight) + bias, approximate=False)
    assert out.shape == (B, S, I) and out.dtype == jnp.float32
    assert bool(jnp.all(jnp.isfinite(out)))
    # erf is the A&S 7.1.26 approximation (|err| < 1.5e-7), so compare with fp32 tolerance.
    assert bool(jnp.allclose(out, ref, atol=1e-5, rtol=1e-5))
    print("KERNEL_OK")
</pallas_src>

<mosaic_0001>
module attributes {stable_mosaic.version = 11 : i64} {
  func.func @_vit_intermediate_kernel(%arg0: i32, %arg1: i32, %arg2: i32, %arg3: memref<16x32xf32, #tpu.memory_space<vmem>>, %arg4: memref<32x128xf32, #tpu.memory_space<vmem>>, %arg5: memref<1x128xf32, #tpu.memory_space<vmem>>, %arg6: memref<16x128xf32, #tpu.memory_space<vmem>>, %arg7: memref<16x128xf32, #tpu.memory_space<vmem>>) attributes {dimension_semantics = [#tpu.dimension_semantics<parallel>, #tpu.dimension_semantics<parallel>, #tpu.dimension_semantics<arbitrary>], iteration_bounds = array<i64: 1, 1, 1>, scalar_prefetch = 0 : i64, scratch_operands = 1 : i64, tpu.core_type = #tpu.core_type<tc>, window_params = [{transform_indices = @transform_0, window_bounds = array<i64: 16, 32>}, {transform_indices = @transform_1, window_bounds = array<i64: 32, 128>}, {transform_indices = @transform_2, window_bounds = array<i64: 1, 128>}, {transform_indices = @transform_3, window_bounds = array<i64: 16, 128>}]} {
    %c0_i32 = arith.constant 0 : i32
    %0 = arith.cmpi eq, %arg2, %c0_i32 : i32
    %1 = arith.extui %0 : i1 to i32
    %c0_i32_0 = arith.constant 0 : i32
    %2 = arith.cmpi ne, %1, %c0_i32_0 : i32
    scf.if %2 {
      %cst_10 = arith.constant 0.000000e+00 : f32
      %12 = vector.broadcast %cst_10 : f32 to vector<16x128xf32>
      %c0_11 = arith.constant 0 : index
      %c0_12 = arith.constant 0 : index
      %13 = vector.load %arg7[%c0_11, %c0_12] : memref<16x128xf32, #tpu.memory_space<vmem>>, vector<16x128xf32>
      tpu.vector_store %arg7[%c0_11, %c0_12], %12 {strides = array<i32>} : memref<16x128xf32, #tpu.memory_space<vmem>>, vector<16x128xf32>,
    } else {
    }
    %c0 = arith.constant 0 : index
    %c0_1 = arith.constant 0 : index
    %3 = vector.load %arg3[%c0, %c0_1] : memref<16x32xf32, #tpu.memory_space<vmem>>, vector<16x32xf32>
    %c0_2 = arith.constant 0 : index
    %c0_3 = arith.constant 0 : index
    %4 = vector.load %arg4[%c0_2, %c0_3] : memref<32x128xf32, #tpu.memory_space<vmem>>, vector<32x128xf32>
    %c0_4 = arith.constant 0 : index
    %c0_5 = arith.constant 0 : index
    %5 = vector.load %arg7[%c0_4, %c0_5] : memref<16x128xf32, #tpu.memory_space<vmem>>, vector<16x128xf32>
    %cst = arith.constant dense<0.000000e+00> : vector<16x128xf32>
    %6 = tpu.matmul %3, %4, %cst {dimension_numbers = #tpu.dot_dimension_numbers<[1], [0], [0], [1], [0, 0, 1, 1], [], []>} : vector<16x32xf32>, vector<32x128xf32>, vector<16x128xf32> -> vector<16x128xf32>
    %7 = arith.addf %5, %6 : vector<16x128xf32>
    %c0_6 = arith.constant 0 : index
    %c0_7 = arith.constant 0 : index
    %8 = vector.load %arg7[%c0_6, %c0_7] : memref<16x128xf32, #tpu.memory_space<vmem>>, vector<16x128xf32>
    tpu.vector_store %arg7[%c0_6, %c0_7], %7 {strides = array<i32>} : memref<16x128xf32, #tpu.memory_space<vmem>>, vector<16x128xf32>,
    %c0_i32_8 = arith.constant 0 : i32
    %9 = arith.cmpi eq, %arg2, %c0_i32_8 : i32
    %10 = arith.extui %9 : i1 to i32
    %c0_i32_9 = arith.constant 0 : i32
    %11 = arith.cmpi ne, %10, %c0_i32_9 : i32
    scf.if %11 {
      %c0_10 = arith.constant 0 : index
      %c0_11 = arith.constant 0 : index
      %12 = vector.load %arg7[%c0_10, %c0_11] : memref<16x128xf32, #tpu.memory_space<vmem>>, vector<16x128xf32>
      %c0_12 = arith.constant 0 : index
      %c0_13 = arith.constant 0 : index
      %13 = vector.load %arg5[%c0_12, %c0_13] : memref<1x128xf32, #tpu.memory_space<vmem>>, vector<1x128xf32>
      %14 = vector.broadcast %13 : vector<1x128xf32> to vector<16x128xf32>
      %15 = arith.addf %12, %14 : vector<16x128xf32>
      %cst_14 = arith.constant 5.000000e-01 : f32
      %16 = vector.broadcast %cst_14 : f32 to vector<16x128xf32>
      %17 = arith.mulf %16, %15 : vector<16x128xf32>
      %cst_15 = arith.constant 0.707106769 : f32
      %18 = vector.broadcast %cst_15 : f32 to vector<16x128xf32>
      %19 = arith.mulf %15, %18 : vector<16x128xf32>
      %cst_16 = arith.constant 0.000000e+00 : f32
      %20 = vector.broadcast %cst_16 : f32 to vector<16x128xf32>
      %21 = arith.cmpf oge, %19, %20 : vector<16x128xf32>
      %cst_17 = arith.constant 1.000000e+00 : f32
      %cst_18 = arith.constant -1.000000e+00 : f32
      %22 = vector.broadcast %cst_17 : f32 to vector<16x128xf32>
      %23 = vector.broadcast %cst_18 : f32 to vector<16x128xf32>
      %24 = arith.select %21, %22, %23 : vector<16x128xi1>, vector<16x128xf32>
      %25 = math.absf %19 : vector<16x128xf32>
      %cst_19 = arith.constant 0.327591091 : f32
      %26 = vector.broadcast %cst_19 : f32 to vector<16x128xf32>
      %27 = arith.mulf %26, %25 : vector<16x128xf32>
      %cst_20 = arith.constant 1.000000e+00 : f32
      %28 = vector.broadcast %cst_20 : f32 to vector<16x128xf32>
      %29 = arith.addf %28, %27 : vector<16x128xf32>
      %cst_21 = arith.constant 1.000000e+00 : f32
      %30 = vector.broadcast %cst_21 : f32 to vector<16x128xf32>
      %31 = arith.divf %30, %29 : vector<16x128xf32>
      %cst_22 = arith.constant 1.06140542 : f32
      %32 = vector.broadcast %cst_22 : f32 to vector<16x128xf32>
      %33 = arith.mulf %32, %31 : vector<16x128xf32>
      %cst_23 = arith.constant -1.45315206 : f32
      %34 = vector.broadcast %cst_23 : f32 to vector<16x128xf32>
      %35 = arith.addf %33, %34 : vector<16x128xf32>
      %36 = arith.mulf %35, %31 : vector<16x128xf32>
      %cst_24 = arith.constant 1.42141378 : f32
      %37 = vector.broadcast %cst_24 : f32 to vector<16x128xf32>
      %38 = arith.addf %36, %37 : vector<16x128xf32>
      %39 = arith.mulf %38, %31 : vector<16x128xf32>
      %cst_25 = arith.constant -0.284496725 : f32
      %40 = vector.broadcast %cst_25 : f32 to vector<16x128xf32>
      %41 = arith.addf %39, %40 : vector<16x128xf32>
      %42 = arith.mulf %41, %31 : vector<16x128xf32>
      %cst_26 = arith.constant 0.254829586 : f32
      %43 = vector.broadcast %cst_26 : f32 to vector<16x128xf32>
      %44 = arith.addf %42, %43 : vector<16x128xf32>
      %45 = arith.mulf %44, %31 : vector<16x128xf32>
      %cst_27 = arith.constant 0.000000e+00 : f32
      %46 = vector.broadcast %cst_27 : f32 to vector<16x128xf32>
      %47 = arith.subf %46, %25 : vector<16x128xf32>
      %48 = arith.mulf %47, %25 : vector<16x128xf32>
      %49 = math.exp %48 : vector<16x128xf32>
      %50 = arith.mulf %45, %49 : vector<16x128xf32>
      %cst_28 = arith.constant 1.000000e+00 : f32
      %51 = vector.broadcast %cst_28 : f32 to vector<16x128xf32>
      %52 = arith.subf %51, %50 : vector<16x128xf32>
      %53 = arith.mulf %24, %52 : vector<16x128xf32>
      %cst_29 = arith.constant 1.000000e+00 : f32
      %54 = vector.broadcast %cst_29 : f32 to vector<16x128xf32>
      %55 = arith.addf %54, %53 : vector<16x128xf32>
      %56 = arith.mulf %17, %55 : vector<16x128xf32>
      %c0_30 = arith.constant 0 : index
      %c0_31 = arith.constant 0 : index
      %57 = vector.load %arg6[%c0_30, %c0_31] : memref<16x128xf32, #tpu.memory_space<vmem>>, vector<16x128xf32>
      tpu.vector_store %arg6[%c0_30, %c0_31], %56 {strides = array<i32>} : memref<16x128xf32, #tpu.memory_space<vmem>>, vector<16x128xf32>,
    } else {
    }
    return
  }
  func.func @transform_0(%arg0: i32, %arg1: i32, %arg2: i32) -> (i32, i32) {
    %c0_i32 = arith.constant 0 : i32
    return %arg0, %arg2 : i32, i32
  }
  func.func @transform_1(%arg0: i32, %arg1: i32, %arg2: i32) -> (i32, i32) {
    %c0_i32 = arith.constant 0 : i32
    return %arg2, %arg1 : i32, i32
  }
  func.func @transform_2(%arg0: i32, %arg1: i32, %arg2: i32) -> (i32, i32) {
    %c0_i32 = arith.constant 0 : i32
    %c0_i32_0 = arith.constant 0 : i32
    return %c0_i32, %arg1 : i32, i32
  }
  func.func @transform_3(%arg0: i32, %arg1: i32, %arg2: i32) -> (i32, i32) {
    %c0_i32 = arith.constant 0 : i32
    return %arg0, %arg1 : i32, i32
  }
}

</mosaic_0001>

<llo_original>
// kernel: tpu_custom_call.1
$region0: #{tpu_custom_call.1}
  #allocation0 [shape = 'u32[]', space=smem, size = 0x4, offset = 0x4, fixed_abs, tag = 'smem constant byte address 0x4 - core index']
  #allocation1 [shape = 'u32[72,128]{1,0:T(1,128)}', space=vmem, size = 0x9000, scoped, tag = 'internal scratch']
  #allocation2 [shape = 'f32[16,128]{1,0:T(8,128)}', space=vmem, size = 0x2000, scoped, tag = 'scratch operand']
  %s0 = inlined_call_operand.hbm [shape: f32[16,32], index: 0, kind: input, shape index: {}]
  %s1 = inlined_call_operand.hbm [shape: f32[32,128], index: 1, kind: input, shape index: {}]
  %s2 = inlined_call_operand.vmem [shape: f32[1,128], index: 2, kind: input, shape index: {}]
  %s3 = inlined_call_operand.hbm [shape: f32[16,128], index: 3, kind: output, shape index: {}]
  %s4 = sld [smem:[#allocation0]]
  $region38: #{tpu_custom_call.1} parent=0
    _
  %s6 = ssub.s32 1, %s4
  %s7 = scalar_select 0, %s6, %s4
  $region1: #{tpu_custom_call.1} parent=0
    #allocation3 [shape = 'u8[8192]{0}', space=vmem, size = 0x2000, scoped, tag = 'input window, operand 0, single buffered']
    #allocation4 [shape = 's32[1]{0}', space=sflag, size = 0x4, scoped, tag = 'scoped memory for tpu_custom_call.1']
    #allocation5 [shape = 's32[1]{0}', space=sflag, size = 0x4, scoped, tag = 'scoped memory for tpu_custom_call.1']
    #allocation6 [shape = 'u8[16384]{0}', space=vmem, size = 0x4000, scoped, tag = 'input window, operand 1, single buffered']
    #allocation7 [shape = 's32[1]{0}', space=sflag, size = 0x4, scoped, tag = 'scoped memory for tpu_custom_call.1']
    #allocation8 [shape = 'u8[8192]{0}', space=vmem, size = 0x2000, scoped, tag = 'output window, operand 0, single buffered']
    %8 = vsyncpa [#allocation4], 0
    %9 = vsyncpa [#allocation7], 0
    %10 = vsyncpa [#allocation5], 0
    // Predicated region
    $region2: #{tpu_custom_call.1} parent=1 // pred_check
      _
    $region3: #{tpu_custom_call.1} parent=1 // pred_check_branch
      %12 = sbr.rel (0) target = $region5
    $region4: #{tpu_custom_call.1} parent=1 // pred_region
      %14 = vsyncadd [#allocation4], 0
      %s15 = sshll.u32 %s0, 4
      %s16 = int_to_ptr.hbm [resolvable:$true] %s15
      %s17 = sshll.u32 [#allocation3], 4
      %s18 = int_to_ptr.vmem [resolvable:$true] %s17
      %23 = dma.hbm_to_vmem [thread:$0]  %s16, 256, %s18, [#allocation4], 128, 128, 8
    $region5: #{tpu_custom_call.1} parent=1 // pred_fallthru
      _
    // Predicated region
    $region6: #{tpu_custom_call.1} parent=1 // pred_check
      _
    $region7: #{tpu_custom_call.1} parent=1 // pred_check_branch
      %25 = sbr.rel (0) target = $region9
    $region8: #{tpu_custom_call.1} parent=1 // pred_region
      %27 = vsyncadd [#allocation7], 0
      %s28 = sshll.u32 %s1, 4
      %s29 = int_to_ptr.hbm [resolvable:$true] %s28
      %s30 = sshll.u32 [#allocation6], 4
      %s31 = int_to_ptr.vmem [resolvable:$true] %s30
      %36 = dma.hbm_to_vmem [thread:$0]  %s29, 512, %s31, [#allocation7], 128, 128, 8
    $region9: #{tpu_custom_call.1} parent=1 // pred_fallthru
      _
    // Predicated region
    $region10: #{tpu_custom_call.1} parent=1 // pred_check
      _
    $region11: #{tpu_custom_call.1} parent=1 // pred_check_branch
      %38 = sbr.rel (0) target = $region13
    $region12: #{tpu_custom_call.1} parent=1 // pred_region
      _
    $region13: #{tpu_custom_call.1} parent=1 // pred_fallthru
      _
    // Predicated region
    $region14: #{tpu_custom_call.1} parent=1 // pred_check
      _
    $region15: #{tpu_custom_call.1} parent=1 // pred_check_branch
      %40 = sbr.rel (0) target = $region17
    $region16: #{tpu_custom_call.1} parent=1 // pred_region
      %42 = dma.done [#allocation4], 256
    $region17: #{tpu_custom_call.1} parent=1 // pred_fallthru
      _
    // Predicated region
    $region18: #{tpu_custom_call.1} parent=1 // pred_check
      _
    $region19: #{tpu_custom_call.1} parent=1 // pred_check_branch
      %44 = sbr.rel (0) target = $region21
    $region20: #{tpu_custom_call.1} parent=1 // pred_region
      %46 = dma.done [#allocation7], 512
    $region21: #{tpu_custom_call.1} parent=1 // pred_fallthru
      _
    %p47 = scmp.eq.s32.totalorder 0, 0
    // Predicated region
    $region22: #{tpu_custom_call.1} parent=1 // pred_check
      %p48 = pneg %p47
    $region23: #{tpu_custom_call.1} parent=1 // pred_check_branch
      %50 = sbr.rel (%p48) target = $region25
    $region24: #{tpu_custom_call.1} parent=1 // pred_region
      %51 = vst [vmem:[#allocation2] sm:$0xff] 0.0
      %52 = vst [vmem:[#allocation2 + $0x8] sm:$0xff] 0.0
    $region25: #{tpu_custom_call.1} parent=1 // pred_fallthru
      _
    %v53 = vld [vmem:[#allocation3] sm:$0xff]
    %v54 = vld [vmem:[#allocation3 + $0x8] sm:$0xff]
    %v55 = vld [vmem:[#allocation6] sm:$0xff]
    %v56 = vld [vmem:[#allocation6 + $0x8] sm:$0xff]
    %v57 = vld [vmem:[#allocation6 + $0x10] sm:$0xff]
    %v58 = vld [vmem:[#allocation6 + $0x18] sm:$0xff]
    %v59 = vld [vmem:[#allocation2] sm:$0xff]
    %v60 = vld [vmem:[#allocation2 + $0x8] sm:$0xff]
    %vm61 = vcmask 261120
    %v63 = vsel %vm61, %v53, 0
    %v66 = vsel %vm61, %v54, 0
    %68 = vmatpush.msra.mxu0 0.0
    %69 = vmatpush.msra.mxu0 0.0
    %70 = vmatpush.msra.mxu0 0.0
    %71 = vmatpush.msra.mxu0 0.0
    %72 = vmatpush.msra.mxu0 0.0
    %73 = vmatpush.msra.mxu0 0.0
    %74 = vmatpush.msra.mxu0 0.0
    %75 = vmatpush.msra.mxu0 0.0
    %76 = vmatpush.msra.mxu0 0.0
    %77 = vmatpush.msra.mxu0 0.0
    %78 = vmatpush.msra.mxu0 0.0
    %79 = vmatpush.msra.mxu0 0.0
    %80 = vmatpush.msra.mxu0 %v58
    %81 = vmatpush.msra.mxu0 %v57
    %82 = vmatpush.msra.mxu0 %v56
    %83 = vmatpush.msra.mxu0 %v55
    %84 = vmatmul.f32.gmra.mxu0 %v63
    %v85 = vpop.f32.mrf.mxu0
    %v86 = vadd.f32 0.0, %v85
    %87 = vmatmul.f32.gmra.mxu0 %v66
    %v88 = vpop.f32.mrf.mxu0
    %v89 = vadd.f32 0.0, %v88
    %90 = vdwg.mxu0
    %v91 = vadd.f32 %v59, %v86
    %v92 = vadd.f32 %v60, %v89
    %93 = vst [vmem:[#allocation2] sm:$0xff] %v91
    %94 = vst [vmem:[#allocation2 + $0x8] sm:$0xff] %v92
    // Predicated region
    $region26: #{tpu_custom_call.1} parent=1 // pred_check
      %p95 = pneg %p47
    $region27: #{tpu_custom_call.1} parent=1 // pred_check_branch
      %97 = sbr.rel (%p95) target = $region29
    $region28: #{tpu_custom_call.1} parent=1 // pred_region
      %v98 = vld [vmem:[#allocation2] sm:$0xff]
      %v99 = vld [vmem:[#allocation2 + $0x8] sm:$0xff]
      %v100 = vld [vmem:[%s2] sm:$0x1]
      %v102 = vperm.slane %v100, 0
      %v104 = vadd.f32 %v98, %v102
      %v105 = vadd.f32 %v99, %v102
      %v106 = vmul.f32 %v104, 0.5
      %v107 = vmul.f32 %v105, 0.5
      %v108 = vmul.f32 %v104, 0.70710677
      %v109 = vmul.f32 %v105, 0.70710677
      %vm110 = vcmp.ge.f32.partialorder %v108, 0.0
      %vm111 = vcmp.ge.f32.partialorder %v109, 0.0
      %v112 = vsel %vm110, 1.0, -1.0
      %v113 = vsel %vm111, 1.0, -1.0
      %v114 = vand.u32 2147483647, %v108
      %v115 = vand.u32 2147483647, %v109
      %v116 = vmul.f32 %v114, 0.3275911
      %v117 = vmul.f32 %v115, 0.3275911
      %v118 = vadd.f32 %v116, 1.0
      %v119 = vadd.f32 %v117, 1.0
      %v120 = vrcp.pop %v118
      %v121 = vmul.f32 %v118, %v120
      %v122 = vsub.f32 1.0, %v121
      %v123 = vmul.f32 %v120, %v122
      %v124 = vadd.f32 %v120, %v123
      %vm125 = vweird.f32 %v118
      %vm126 = vweird.f32 %v120
      %vm127 = vmor %vm125, %vm126
      %v128 = vsel %vm127, %v120, %v124
      %v129 = vand.u32 2147483647, %v118
      %vm130 = vcmp.eq.f32.partialorder %v129, 8.507059e+37
      %v131 = vand.u32 %v118, 2147483648
      %v132 = vor.u32 1.1754944e-38, %v131
      %v133 = vsel %vm130, %v132, %v128
      %v134 = vmul.f32 1.0, %v133
      %v135 = vrcp.pop %v119
      %v136 = vmul.f32 %v119, %v135
      %v137 = vsub.f32 1.0, %v136
      %v138 = vmul.f32 %v135, %v137
      %v139 = vadd.f32 %v135, %v138
      %vm140 = vweird.f32 %v119
      %vm141 = vweird.f32 %v135
      %vm142 = vmor %vm140, %vm141
      %v143 = vsel %vm142, %v135, %v139
      %v144 = vand.u32 2147483647, %v119
      %vm145 = vcmp.eq.f32.partialorder %v144, 8.507059e+37
      %v146 = vand.u32 %v119, 2147483648
      %v147 = vor.u32 1.1754944e-38, %v146
      %v148 = vsel %vm145, %v147, %v143
      %v149 = vmul.f32 1.0, %v148
      %v150 = vmul.f32 %v134, 1.0614054
      %v151 = vmul.f32 %v149, 1.0614054
      %v152 = vadd.f32 %v150, -1.4531521
      %v153 = vadd.f32 %v151, -1.4531521
      %v154 = vmul.f32 %v152, %v134
      %v155 = vmul.f32 %v153, %v149
      %v156 = vadd.f32 %v154, 1.4214138
      %v157 = vadd.f32 %v155, 1.4214138
      %v158 = vmul.f32 %v156, %v134
      %v159 = vmul.f32 %v157, %v149
      %v160 = vadd.f32 %v158, -0.28449672
      %v161 = vadd.f32 %v159, -0.28449672
      %v162 = vmul.f32 %v160, %v134
      %v163 = vmul.f32 %v161, %v149
      %v164 = vadd.f32 %v162, 0.2548296
      %v165 = vadd.f32 %v163, 0.2548296
      %v166 = vmul.f32 %v164, %v134
      %v167 = vmul.f32 %v165, %v149
      %v168 = vsub.f32 0.0, %v114
      %v169 = vsub.f32 0.0, %v115
      %v170 = vmul.f32 %v168, %v114
      %v171 = vmul.f32 %v169, %v115
      %v172 = vmul.f32 %v170, 1.442695
      %v173 = vpow.pop %v172
      %v174 = vmul.f32 %v171, 1.442695
      %v175 = vpow.pop %v174
      %v176 = vmul.f32 %v166, %v173
      %v177 = vmul.f32 %v167, %v175
      %v178 = vsub.f32 1.0, %v176
      %v179 = vsub.f32 1.0, %v177
      %v180 = vmul.f32 %v112, %v178
      %v181 = vmul.f32 %v113, %v179
      %v182 = vadd.f32 %v180, 1.0
      %v183 = vadd.f32 %v181, 1.0
      %v184 = vmul.f32 %v106, %v182
      %v185 = vmul.f32 %v107, %v183
      %186 = vst [vmem:[#allocation8] sm:$0xff] %v184
      %187 = vst [vmem:[#allocation8 + $0x8] sm:$0xff] %v185
    $region29: #{tpu_custom_call.1} parent=1 // pred_fallthru
      _
    // Predicated region
    $region30: #{tpu_custom_call.1} parent=1 // pred_check
      _
    $region31: #{tpu_custom_call.1} parent=1 // pred_check_branch
      %189 = sbr.rel (0) target = $region33
    $region32: #{tpu_custom_call.1} parent=1 // pred_region
      %191 = vsyncadd [#allocation5], 0
      %s192 = sshll.u32 [#allocation8], 4
      %s193 = int_to_ptr.vmem [resolvable:$true] %s192
      %s194 = sshll.u32 %s3, 4
      %s195 = int_to_ptr.hbm [resolvable:$true] %s194
      %200 = dma.vmem_to_hbm [thread:$0]  %s193, 256, %s195, [#allocation5], 128, 128, 8
    $region33: #{tpu_custom_call.1} parent=1 // pred_fallthru
      _
    // Predicated region
    $region34: #{tpu_custom_call.1} parent=1 // pred_check
      _
    $region35: #{tpu_custom_call.1} parent=1 // pred_check_branch
      %202 = sbr.rel (0) target = $region37
    $region36: #{tpu_custom_call.1} parent=1 // pred_region
      %204 = dma.done [#allocation5], 256
    $region37: #{tpu_custom_call.1} parent=1 // pred_fallthru
      _
    %205 = vsyncpa [#allocation4], 1
    %206 = vsyncpa [#allocation7], 1
    %207 = vsyncpa [#allocation5], 1

</llo_original>
